<compile_context>
chip_gen: v7x
topology: tpu7x:2x2x1
jax: 0.10.0
libtpu: 0.0.40
codegen_flags: <defaults>
</compile_context>

<pallas_src>
import functools

import jax
import jax.numpy as jnp
import numpy as np
from jax.experimental import pallas as pl
from jax.experimental.pallas import tpu as pltpu

# Safe on every generation (v7x has 64 MiB per TensorCore); never binds for these blocks.
_VMEM_LIMIT = 32 * 1024 * 1024


# ---------------------------------------------------------------------------
# Pallas kernel: direct 3x3 conv (padding=1) over [x_i, m, dirty_i], fused with
# the trailing cat([x, conv], dim=1).  One batch element per grid step.
#
#   w_ref  : (C_out, 27)              VMEM  flattened OIHW weight, k = ci*9 + ky*3 + kx
#   b_ref  : (C_out, 1)               VMEM
#   x_ref  : (1, in_chans, H*W)       VMEM  passthrough channels
#   xi/m/d : (1, 1, H*W)              VMEM  conv input planes (flattened, lane-dense)
#   out_ref: (1, in_chans+C_out, H*W)
# ---------------------------------------------------------------------------
def _conv3x3_cat_kernel(w_ref, b_ref, x_ref, xi_ref, m_ref, d_ref, out_ref, *, img_w):
    hw = xi_ref.shape[-1]
    c_out = w_ref.shape[0]
    in_chans = x_ref.shape[1]

    # Flat-index iota + edge-validity masks: this *is* the zero padding (no jnp.pad
    # copies in HBM, no halo tiles).  Row masks need only comparisons on the flat
    # index; the column index uses a bitwise AND when W is a power of two.
    p = jax.lax.broadcasted_iota(jnp.int32, (1, hw), 1)
    if (img_w & (img_w - 1)) == 0:
        col = p & (img_w - 1)
    else:
        col = jax.lax.rem(p, img_w)  # TODO(synk): vector rem path untested for odd W
    y_ok = {-1: p >= img_w, 0: None, 1: p < hw - img_w}
    x_ok = {-1: col >= 1, 0: None, 1: col <= img_w - 2}

    # Channel order matches cat([x_i, m, dirty_i], dim=1).
    planes = (xi_ref[0], m_ref[0], d_ref[0])          # each (1, H*W)
    wmat = w_ref[...]                                  # (C_out, 27), loaded once

    # Output channels on the sublane axis; initialise with the bias.  Tap-outer /
    # channel-vectorised: only C_out + ~3 planes are live at any time.
    acc = jnp.broadcast_to(b_ref[...], (c_out, hw))

    for ci in range(3):
        plane = planes[ci]
        for dy in (-1, 0, 1):
            for dx in (-1, 0, 1):
                off = dy * img_w + dx                  # tap offset in flat row-major space
                # tap[p] = plane[p + off] (circular); wrapped positions are masked below.
                tap = plane if off == 0 else pltpu.roll(plane, (-off) % hw, axis=1)
                mask = y_ok[dy]
                if x_ok[dx] is not None:
                    mask = x_ok[dx] if mask is None else jnp.logical_and(mask, x_ok[dx])
                if mask is not None:                   # zero padding at the image border
                    tap = jnp.where(mask, tap, 0.0)
                k = ci * 9 + (dy + 1) * 3 + (dx + 1)   # matches weight.reshape(C_out, 27)
                acc = acc + wmat[:, k:k + 1] * tap     # (C_out,1)*(1,HW) broadcast FMA

    # Fused torch.cat((x, conv), dim=1).  Both stores are full-lane (H*W-wide) vst;
    # the whole (in_chans+C_out, H*W) block is then DMA'd to HBM as one dense tile.
    out_ref[0, :in_chans, :] = x_ref[0]
    out_ref[0, in_chans:, :] = acc


def conv3x3_cat_pallas(x, x_i, m, dirty_i, weight, bias):
    """cat([x, Conv2d(3, C_out, k=3, pad=1)(cat([x_i, m, dirty_i], 1))], 1) as one
    Pallas kernel.  All wrapper reshapes are contiguous (free metadata ops)."""
    n, in_chans, h, w = x.shape
    c_out = weight.shape[0]
    hw = h * w
    c_tot = in_chans + c_out

    x_r = x.reshape(n, in_chans, hw).astype(jnp.float32)
    xi_r = x_i.reshape(n, 1, hw).astype(jnp.float32)
    m_r = m.reshape(n, 1, hw).astype(jnp.float32)
    d_r = dirty_i.reshape(n, 1, hw).astype(jnp.float32)
    w_r = weight.reshape(c_out, weight.shape[1] * 9).astype(jnp.float32)   # (C_out, 27)
    b_r = bias.reshape(c_out, 1).astype(jnp.float32)

    plane_spec = pl.BlockSpec((1, 1, hw), lambda i: (i, 0, 0))
    out = pl.pallas_call(
        functools.partial(_conv3x3_cat_kernel, img_w=w),
        out_shape=jax.ShapeDtypeStruct((n, c_tot, hw), jnp.float32),
        grid=(n,),
        in_specs=[
            pl.BlockSpec((c_out, w_r.shape[1]), lambda i: (0, 0)),   # weights (VMEM resident)
            pl.BlockSpec((c_out, 1), lambda i: (0, 0)),              # bias
            pl.BlockSpec((1, in_chans, hw), lambda i: (i, 0, 0)),    # x passthrough
            plane_spec,                                              # x_i plane
            plane_spec,                                              # m plane
            plane_spec,                                              # dirty plane
        ],
        out_specs=pl.BlockSpec((1, c_tot, hw), lambda i: (i, 0, 0)),
        compiler_params=pltpu.CompilerParams(
            dimension_semantics=("parallel",),   # batch steps shard across v7x's 2 TCs
            vmem_limit_bytes=_VMEM_LIMIT,
        ),
    )(w_r, b_r, x_r, xi_r, m_r, d_r)
    return out.reshape(n, c_tot, h, w)


# ---------------------------------------------------------------------------
# GradBlock forward
# ---------------------------------------------------------------------------
def grad_block_forward(x, x_i, dirty_i, psf_i, conv_w, conv_b):
    # FFT stage (XLA): no Pallas FFT primitive.  The elementwise spectrum product is
    # intentionally left in XLA as well (perf review option (a)): Mosaic refs cannot
    # hold complex64, so a Pallas cmul would need real/imag split + recombine HBM
    # passes, while XLA fuses the product into one read(2 complex)/write(1 complex)
    # pass at the HBM roofline.
    fs = lambda t: jnp.fft.fftshift(t, axes=(-2, -1))
    ifs = lambda t: jnp.fft.ifftshift(t, axes=(-2, -1))
    prod = jnp.fft.fft2(fs(x_i)) * jnp.fft.fft2(fs(psf_i))
    m = jnp.real(ifs(jnp.fft.ifft2(prod))).astype(jnp.float32)

    # Conv + concat stage (Pallas).
    return conv3x3_cat_pallas(x, x_i, m, dirty_i, conv_w, conv_b)


# Pure-JAX reference (same math, XLA conv) for the correctness cross-check.
def _ref_forward(x, x_i, dirty_i, psf_i, conv_w, conv_b):
    fs = lambda t: jnp.fft.fftshift(t, axes=(-2, -1))
    ifs = lambda t: jnp.fft.ifftshift(t, axes=(-2, -1))
    m = jnp.real(ifs(jnp.fft.ifft2(jnp.fft.fft2(fs(x_i)) * jnp.fft.fft2(fs(psf_i)))))
    xi = jnp.concatenate([x_i, m.astype(jnp.float32), dirty_i], axis=1)
    conv = jax.lax.conv_general_dilated(
        xi, conv_w, window_strides=(1, 1), padding="SAME",
        dimension_numbers=("NCHW", "OIHW", "NCHW"),
        precision=jax.lax.Precision.HIGHEST)
    conv = conv + conv_b[None, :, None, None]
    return jnp.concatenate([x, conv], axis=1)


if __name__ == "__main__":
    N, in_chans, out_chans, H, W = 2, 4, 4, 16, 16

    key = jax.random.PRNGKey(0)
    k1, k2, k3, k4, k5, k6 = jax.random.split(key, 6)
    x = jax.random.normal(k1, (N, in_chans, H, W), jnp.float32)
    x_i = jax.random.normal(k2, (N, 1, H, W), jnp.float32)
    dirty_i = jax.random.normal(k3, (N, 1, H, W), jnp.float32)
    psf_i = jax.random.normal(k4, (N, 1, H, W), jnp.float32)

    # Deterministic Conv2d(3, out_chans, kernel_size=3) params (PyTorch-style uniform init).
    fan_in = 3 * 3 * 3
    bound = 1.0 / np.sqrt(fan_in)
    conv_w = jax.random.uniform(k5, (out_chans, 3, 3, 3), jnp.float32, -bound, bound)
    conv_b = jax.random.uniform(k6, (out_chans,), jnp.float32, -bound, bound)

    out = jax.jit(grad_block_forward)(x, x_i, dirty_i, psf_i, conv_w, conv_b)
    out = jax.block_until_ready(out)
    assert out.shape == (N, in_chans + out_chans, H, W), out.shape

    ref = jax.block_until_ready(_ref_forward(x, x_i, dirty_i, psf_i, conv_w, conv_b))
    np.testing.assert_allclose(np.asarray(out), np.asarray(ref), rtol=1e-2, atol=1e-2)

    print("KERNEL_OK")
</pallas_src>

<mosaic_0001>
module attributes {stable_mosaic.version = 11 : i64} {
  func.func @_conv3x3_cat_kernel(%arg0: i32, %arg1: memref<4x27xf32, #tpu.memory_space<vmem>>, %arg2: memref<4x1xf32, #tpu.memory_space<vmem>>, %arg3: memref<1x4x256xf32, #tpu.memory_space<vmem>>, %arg4: memref<1x1x256xf32, #tpu.memory_space<vmem>>, %arg5: memref<1x1x256xf32, #tpu.memory_space<vmem>>, %arg6: memref<1x1x256xf32, #tpu.memory_space<vmem>>, %arg7: memref<1x8x256xf32, #tpu.memory_space<vmem>>) attributes {dimension_semantics = [#tpu.dimension_semantics<parallel>], iteration_bounds = array<i64: 2>, scalar_prefetch = 0 : i64, scratch_operands = 0 : i64, tpu.core_type = #tpu.core_type<tc>, window_params = [{pipeline_mode = #tpu.pipeline_mode<synchronous>, transform_indices = @transform_0, window_bounds = array<i64: 4, 27>}, {pipeline_mode = #tpu.pipeline_mode<synchronous>, transform_indices = @transform_1, window_bounds = array<i64: 4, 1>}, {transform_indices = @transform_2, window_bounds = array<i64: 1, 4, 256>}, {transform_indices = @transform_3, window_bounds = array<i64: 1, 1, 256>}, {transform_indices = @transform_4, window_bounds = array<i64: 1, 1, 256>}, {transform_indices = @transform_5, window_bounds = array<i64: 1, 1, 256>}, {transform_indices = @transform_6, window_bounds = array<i64: 1, 8, 256>}]} {
    %0 = tpu.iota {dimensions = array<i32: 1>} : vector<1x256xi32>
    %c15_i32 = arith.constant 15 : i32
    %1 = vector.broadcast %c15_i32 : i32 to vector<1x256xi32>
    %2 = arith.andi %0, %1 : vector<1x256xi32>
    %c16_i32 = arith.constant 16 : i32
    %3 = vector.broadcast %c16_i32 : i32 to vector<1x256xi32>
    %4 = arith.cmpi sge, %0, %3 : vector<1x256xi32>
    %c240_i32 = arith.constant 240 : i32
    %5 = vector.broadcast %c240_i32 : i32 to vector<1x256xi32>
    %6 = arith.cmpi slt, %0, %5 : vector<1x256xi32>
    %c1_i32 = arith.constant 1 : i32
    %7 = vector.broadcast %c1_i32 : i32 to vector<1x256xi32>
    %8 = arith.cmpi sge, %2, %7 : vector<1x256xi32>
    %c14_i32 = arith.constant 14 : i32
    %9 = vector.broadcast %c14_i32 : i32 to vector<1x256xi32>
    %10 = arith.cmpi sle, %2, %9 : vector<1x256xi32>
    %c0 = arith.constant 0 : index
    %c0_0 = arith.constant 0 : index
    %c0_1 = arith.constant 0 : index
    %11 = vector.load %arg4[%c0, %c0_0, %c0_1] : memref<1x1x256xf32, #tpu.memory_space<vmem>>, vector<1x1x256xf32>
    %12 = vector.shape_cast %11 : vector<1x1x256xf32> to vector<1x256xf32>
    %c0_2 = arith.constant 0 : index
    %c0_3 = arith.constant 0 : index
    %c0_4 = arith.constant 0 : index
    %13 = vector.load %arg5[%c0_2, %c0_3, %c0_4] : memref<1x1x256xf32, #tpu.memory_space<vmem>>, vector<1x1x256xf32>
    %14 = vector.shape_cast %13 : vector<1x1x256xf32> to vector<1x256xf32>
    %c0_5 = arith.constant 0 : index
    %c0_6 = arith.constant 0 : index
    %c0_7 = arith.constant 0 : index
    %15 = vector.load %arg6[%c0_5, %c0_6, %c0_7] : memref<1x1x256xf32, #tpu.memory_space<vmem>>, vector<1x1x256xf32>
    %16 = vector.shape_cast %15 : vector<1x1x256xf32> to vector<1x256xf32>
    %c0_8 = arith.constant 0 : index
    %c0_9 = arith.constant 0 : index
    %17 = vector.load %arg1[%c0_8, %c0_9] : memref<4x27xf32, #tpu.memory_space<vmem>>, vector<4x27xf32>
    %c0_10 = arith.constant 0 : index
    %c0_11 = arith.constant 0 : index
    %18 = vector.load %arg2[%c0_10, %c0_11] : memref<4x1xf32, #tpu.memory_space<vmem>>, vector<4x1xf32>
    %19 = vector.shape_cast %18 : vector<4x1xf32> to vector<4x1xf32>
    %20 = vector.broadcast %19 : vector<4x1xf32> to vector<4x256xf32>
    %c17_i32 = arith.constant 17 : i32
    %21 = tpu.dynamic_rotate %12 by %c17_i32 dim 1 : vector<1x256xf32>, i32 -> vector<1x256xf32>
    %22 = arith.andi %4, %8 : vector<1x256xi1>
    %cst = arith.constant 0.000000e+00 : f32
    %23 = vector.broadcast %cst : f32 to vector<1x256xf32>
    %24 = arith.select %22, %21, %23 : vector<1x256xi1>, vector<1x256xf32>
    %25 = vector.extract_strided_slice %17 {offsets = [0, 0], sizes = [4, 1], strides = [1, 1]} : vector<4x27xf32> to vector<4x1xf32>
    %26 = vector.broadcast %25 : vector<4x1xf32> to vector<4x256xf32>
    %27 = vector.broadcast %24 : vector<1x256xf32> to vector<4x256xf32>
    %28 = arith.mulf %26, %27 : vector<4x256xf32>
    %29 = arith.addf %20, %28 : vector<4x256xf32>
    %c16_i32_12 = arith.constant 16 : i32
    %30 = tpu.dynamic_rotate %12 by %c16_i32_12 dim 1 : vector<1x256xf32>, i32 -> vector<1x256xf32>
    %cst_13 = arith.constant 0.000000e+00 : f32
    %31 = vector.broadcast %cst_13 : f32 to vector<1x256xf32>
    %32 = arith.select %4, %30, %31 : vector<1x256xi1>, vector<1x256xf32>
    %33 = vector.extract_strided_slice %17 {offsets = [0, 1], sizes = [4, 1], strides = [1, 1]} : vector<4x27xf32> to vector<4x1xf32>
    %34 = vector.broadcast %33 : vector<4x1xf32> to vector<4x256xf32>
    %35 = vector.broadcast %32 : vector<1x256xf32> to vector<4x256xf32>
    %36 = arith.mulf %34, %35 : vector<4x256xf32>
    %37 = arith.addf %29, %36 : vector<4x256xf32>
    %c15_i32_14 = arith.constant 15 : i32
    %38 = tpu.dynamic_rotate %12 by %c15_i32_14 dim 1 : vector<1x256xf32>, i32 -> vector<1x256xf32>
    %39 = arith.andi %4, %10 : vector<1x256xi1>
    %cst_15 = arith.constant 0.000000e+00 : f32
    %40 = vector.broadcast %cst_15 : f32 to vector<1x256xf32>
    %41 = arith.select %39, %38, %40 : vector<1x256xi1>, vector<1x256xf32>
    %42 = vector.extract_strided_slice %17 {offsets = [0, 2], sizes = [4, 1], strides = [1, 1]} : vector<4x27xf32> to vector<4x1xf32>
    %43 = vector.broadcast %42 : vector<4x1xf32> to vector<4x256xf32>
    %44 = vector.broadcast %41 : vector<1x256xf32> to vector<4x256xf32>
    %45 = arith.mulf %43, %44 : vector<4x256xf32>
    %46 = arith.addf %37, %45 : vector<4x256xf32>
    %c1_i32_16 = arith.constant 1 : i32
    %47 = tpu.dynamic_rotate %12 by %c1_i32_16 dim 1 : vector<1x256xf32>, i32 -> vector<1x256xf32>
    %cst_17 = arith.constant 0.000000e+00 : f32
    %48 = vector.broadcast %cst_17 : f32 to vector<1x256xf32>
    %49 = arith.select %8, %47, %48 : vector<1x256xi1>, vector<1x256xf32>
    %50 = vector.extract_strided_slice %17 {offsets = [0, 3], sizes = [4, 1], strides = [1, 1]} : vector<4x27xf32> to vector<4x1xf32>
    %51 = vector.broadcast %50 : vector<4x1xf32> to vector<4x256xf32>
    %52 = vector.broadcast %49 : vector<1x256xf32> to vector<4x256xf32>
    %53 = arith.mulf %51, %52 : vector<4x256xf32>
    %54 = arith.addf %46, %53 : vector<4x256xf32>
    %55 = vector.extract_strided_slice %17 {offsets = [0, 4], sizes = [4, 1], strides = [1, 1]} : vector<4x27xf32> to vector<4x1xf32>
    %56 = vector.broadcast %55 : vector<4x1xf32> to vector<4x256xf32>
    %57 = vector.broadcast %12 : vector<1x256xf32> to vector<4x256xf32>
    %58 = arith.mulf %56, %57 : vector<4x256xf32>
    %59 = arith.addf %54, %58 : vector<4x256xf32>
    %c255_i32 = arith.constant 255 : i32
    %60 = tpu.dynamic_rotate %12 by %c255_i32 dim 1 : vector<1x256xf32>, i32 -> vector<1x256xf32>
    %cst_18 = arith.constant 0.000000e+00 : f32
    %61 = vector.broadcast %cst_18 : f32 to vector<1x256xf32>
    %62 = arith.select %10, %60, %61 : vector<1x256xi1>, vector<1x256xf32>
    %63 = vector.extract_strided_slice %17 {offsets = [0, 5], sizes = [4, 1], strides = [1, 1]} : vector<4x27xf32> to vector<4x1xf32>
    %64 = vector.broadcast %63 : vector<4x1xf32> to vector<4x256xf32>
    %65 = vector.broadcast %62 : vector<1x256xf32> to vector<4x256xf32>
    %66 = arith.mulf %64, %65 : vector<4x256xf32>
    %67 = arith.addf %59, %66 : vector<4x256xf32>
    %c241_i32 = arith.constant 241 : i32
    %68 = tpu.dynamic_rotate %12 by %c241_i32 dim 1 : vector<1x256xf32>, i32 -> vector<1x256xf32>
    %69 = arith.andi %6, %8 : vector<1x256xi1>
    %cst_19 = arith.constant 0.000000e+00 : f32
    %70 = vector.broadcast %cst_19 : f32 to vector<1x256xf32>
    %71 = arith.select %69, %68, %70 : vector<1x256xi1>, vector<1x256xf32>
    %72 = vector.extract_strided_slice %17 {offsets = [0, 6], sizes = [4, 1], strides = [1, 1]} : vector<4x27xf32> to vector<4x1xf32>
    %73 = vector.broadcast %72 : vector<4x1xf32> to vector<4x256xf32>
    %74 = vector.broadcast %71 : vector<1x256xf32> to vector<4x256xf32>
    %75 = arith.mulf %73, %74 : vector<4x256xf32>
    %76 = arith.addf %67, %75 : vector<4x256xf32>
    %c240_i32_20 = arith.constant 240 : i32
    %77 = tpu.dynamic_rotate %12 by %c240_i32_20 dim 1 : vector<1x256xf32>, i32 -> vector<1x256xf32>
    %cst_21 = arith.constant 0.000000e+00 : f32
    %78 = vector.broadcast %cst_21 : f32 to vector<1x256xf32>
    %79 = arith.select %6, %77, %78 : vector<1x256xi1>, vector<1x256xf32>
    %80 = vector.extract_strided_slice %17 {offsets = [0, 7], sizes = [4, 1], strides = [1, 1]} : vector<4x27xf32> to vector<4x1xf32>
    %81 = vector.broadcast %80 : vector<4x1xf32> to vector<4x256xf32>
    %82 = vector.broadcast %79 : vector<1x256xf32> to vector<4x256xf32>
    %83 = arith.mulf %81, %82 : vector<4x256xf32>
    %84 = arith.addf %76, %83 : vector<4x256xf32>
    %c239_i32 = arith.constant 239 : i32
    %85 = tpu.dynamic_rotate %12 by %c239_i32 dim 1 : vector<1x256xf32>, i32 -> vector<1x256xf32>
    %86 = arith.andi %6, %10 : vector<1x256xi1>
    %cst_22 = arith.constant 0.000000e+00 : f32
    %87 = vector.broadcast %cst_22 : f32 to vector<1x256xf32>
    %88 = arith.select %86, %85, %87 : vector<1x256xi1>, vector<1x256xf32>
    %89 = vector.extract_strided_slice %17 {offsets = [0, 8], sizes = [4, 1], strides = [1, 1]} : vector<4x27xf32> to vector<4x1xf32>
    %90 = vector.broadcast %89 : vector<4x1xf32> to vector<4x256xf32>
    %91 = vector.broadcast %88 : vector<1x256xf32> to vector<4x256xf32>
    %92 = arith.mulf %90, %91 : vector<4x256xf32>
    %93 = arith.addf %84, %92 : vector<4x256xf32>
    %c17_i32_23 = arith.constant 17 : i32
    %94 = tpu.dynamic_rotate %14 by %c17_i32_23 dim 1 : vector<1x256xf32>, i32 -> vector<1x256xf32>
    %95 = arith.andi %4, %8 : vector<1x256xi1>
    %cst_24 = arith.constant 0.000000e+00 : f32
    %96 = vector.broadcast %cst_24 : f32 to vector<1x256xf32>
    %97 = arith.select %95, %94, %96 : vector<1x256xi1>, vector<1x256xf32>
    %98 = vector.extract_strided_slice %17 {offsets = [0, 9], sizes = [4, 1], strides = [1, 1]} : vector<4x27xf32> to vector<4x1xf32>
    %99 = vector.broadcast %98 : vector<4x1xf32> to vector<4x256xf32>
    %100 = vector.broadcast %97 : vector<1x256xf32> to vector<4x256xf32>
    %101 = arith.mulf %99, %100 : vector<4x256xf32>
    %102 = arith.addf %93, %101 : vector<4x256xf32>
    %c16_i32_25 = arith.constant 16 : i32
    %103 = tpu.dynamic_rotate %14 by %c16_i32_25 dim 1 : vector<1x256xf32>, i32 -> vector<1x256xf32>
    %cst_26 = arith.constant 0.000000e+00 : f32
    %104 = vector.broadcast %cst_26 : f32 to vector<1x256xf32>
    %105 = arith.select %4, %103, %104 : vector<1x256xi1>, vector<1x256xf32>
    %106 = vector.extract_strided_slice %17 {offsets = [0, 10], sizes = [4, 1], strides = [1, 1]} : vector<4x27xf32> to vector<4x1xf32>
    %107 = vector.broadcast %106 : vector<4x1xf32> to vector<4x256xf32>
    %108 = vector.broadcast %105 : vector<1x256xf32> to vector<4x256xf32>
    %109 = arith.mulf %107, %108 : vector<4x256xf32>
    %110 = arith.addf %102, %109 : vector<4x256xf32>
    %c15_i32_27 = arith.constant 15 : i32
    %111 = tpu.dynamic_rotate %14 by %c15_i32_27 dim 1 : vector<1x256xf32>, i32 -> vector<1x256xf32>
    %112 = arith.andi %4, %10 : vector<1x256xi1>
    %cst_28 = arith.constant 0.000000e+00 : f32
    %113 = vector.broadcast %cst_28 : f32 to vector<1x256xf32>
    %114 = arith.select %112, %111, %113 : vector<1x256xi1>, vector<1x256xf32>
    %115 = vector.extract_strided_slice %17 {offsets = [0, 11], sizes = [4, 1], strides = [1, 1]} : vector<4x27xf32> to vector<4x1xf32>
    %116 = vector.broadcast %115 : vector<4x1xf32> to vector<4x256xf32>
    %117 = vector.broadcast %114 : vector<1x256xf32> to vector<4x256xf32>
    %118 = arith.mulf %116, %117 : vector<4x256xf32>
    %119 = arith.addf %110, %118 : vector<4x256xf32>
    %c1_i32_29 = arith.constant 1 : i32
    %120 = tpu.dynamic_rotate %14 by %c1_i32_29 dim 1 : vector<1x256xf32>, i32 -> vector<1x256xf32>
    %cst_30 = arith.constant 0.000000e+00 : f32
    %121 = vector.broadcast %cst_30 : f32 to vector<1x256xf32>
    %122 = arith.select %8, %120, %121 : vector<1x256xi1>, vector<1x256xf32>
    %123 = vector.extract_strided_slice %17 {offsets = [0, 12], sizes = [4, 1], strides = [1, 1]} : vector<4x27xf32> to vector<4x1xf32>
    %124 = vector.broadcast %123 : vector<4x1xf32> to vector<4x256xf32>
    %125 = vector.broadcast %122 : vector<1x256xf32> to vector<4x256xf32>
    %126 = arith.mulf %124, %125 : vector<4x256xf32>
    %127 = arith.addf %119, %126 : vector<4x256xf32>
    %128 = vector.extract_strided_slice %17 {offsets = [0, 13], sizes = [4, 1], strides = [1, 1]} : vector<4x27xf32> to vector<4x1xf32>
    %129 = vector.broadcast %128 : vector<4x1xf32> to vector<4x256xf32>
    %130 = vector.broadcast %14 : vector<1x256xf32> to vector<4x256xf32>
    %131 = arith.mulf %129, %130 : vector<4x256xf32>
    %132 = arith.addf %127, %131 : vector<4x256xf32>
    %c255_i32_31 = arith.constant 255 : i32
    %133 = tpu.dynamic_rotate %14 by %c255_i32_31 dim 1 : vector<1x256xf32>, i32 -> vector<1x256xf32>
    %cst_32 = arith.constant 0.000000e+00 : f32
    %134 = vector.broadcast %cst_32 : f32 to vector<1x256xf32>
    %135 = arith.select %10, %133, %134 : vector<1x256xi1>, vector<1x256xf32>
    %136 = vector.extract_strided_slice %17 {offsets = [0, 14], sizes = [4, 1], strides = [1, 1]} : vector<4x27xf32> to vector<4x1xf32>
    %137 = vector.broadcast %136 : vector<4x1xf32> to vector<4x256xf32>
    %138 = vector.broadcast %135 : vector<1x256xf32> to vector<4x256xf32>
    %139 = arith.mulf %137, %138 : vector<4x256xf32>
    %140 = arith.addf %132, %139 : vector<4x256xf32>
    %c241_i32_33 = arith.constant 241 : i32
    %141 = tpu.dynamic_rotate %14 by %c241_i32_33 dim 1 : vector<1x256xf32>, i32 -> vector<1x256xf32>
    %142 = arith.andi %6, %8 : vector<1x256xi1>
    %cst_34 = arith.constant 0.000000e+00 : f32
    %143 = vector.broadcast %cst_34 : f32 to vector<1x256xf32>
    %144 = arith.select %142, %141, %143 : vector<1x256xi1>, vector<1x256xf32>
    %145 = vector.extract_strided_slice %17 {offsets = [0, 15], sizes = [4, 1], strides = [1, 1]} : vector<4x27xf32> to vector<4x1xf32>
    %146 = vector.broadcast %145 : vector<4x1xf32> to vector<4x256xf32>
    %147 = vector.broadcast %144 : vector<1x256xf32> to vector<4x256xf32>
    %148 = arith.mulf %146, %147 : vector<4x256xf32>
    %149 = arith.addf %140, %148 : vector<4x256xf32>
    %c240_i32_35 = arith.constant 240 : i32
    %150 = tpu.dynamic_rotate %14 by %c240_i32_35 dim 1 : vector<1x256xf32>, i32 -> vector<1x256xf32>
    %cst_36 = arith.constant 0.000000e+00 : f32
    %151 = vector.broadcast %cst_36 : f32 to vector<1x256xf32>
    %152 = arith.select %6, %150, %151 : vector<1x256xi1>, vector<1x256xf32>
    %153 = vector.extract_strided_slice %17 {offsets = [0, 16], sizes = [4, 1], strides = [1, 1]} : vector<4x27xf32> to vector<4x1xf32>
    %154 = vector.broadcast %153 : vector<4x1xf32> to vector<4x256xf32>
    %155 = vector.broadcast %152 : vector<1x256xf32> to vector<4x256xf32>
    %156 = arith.mulf %154, %155 : vector<4x256xf32>
    %157 = arith.addf %149, %156 : vector<4x256xf32>
    %c239_i32_37 = arith.constant 239 : i32
    %158 = tpu.dynamic_rotate %14 by %c239_i32_37 dim 1 : vector<1x256xf32>, i32 -> vector<1x256xf32>
    %159 = arith.andi %6, %10 : vector<1x256xi1>
    %cst_38 = arith.constant 0.000000e+00 : f32
    %160 = vector.broadcast %cst_38 : f32 to vector<1x256xf32>
    %161 = arith.select %159, %158, %160 : vector<1x256xi1>, vector<1x256xf32>
    %162 = vector.extract_strided_slice %17 {offsets = [0, 17], sizes = [4, 1], strides = [1, 1]} : vector<4x27xf32> to vector<4x1xf32>
    %163 = vector.broadcast %162 : vector<4x1xf32> to vector<4x256xf32>
    %164 = vector.broadcast %161 : vector<1x256xf32> to vector<4x256xf32>
    %165 = arith.mulf %163, %164 : vector<4x256xf32>
    %166 = arith.addf %157, %165 : vector<4x256xf32>
    %c17_i32_39 = arith.constant 17 : i32
    %167 = tpu.dynamic_rotate %16 by %c17_i32_39 dim 1 : vector<1x256xf32>, i32 -> vector<1x256xf32>
    %168 = arith.andi %4, %8 : vector<1x256xi1>
    %cst_40 = arith.constant 0.000000e+00 : f32
    %169 = vector.broadcast %cst_40 : f32 to vector<1x256xf32>
    %170 = arith.select %168, %167, %169 : vector<1x256xi1>, vector<1x256xf32>
    %171 = vector.extract_strided_slice %17 {offsets = [0, 18], sizes = [4, 1], strides = [1, 1]} : vector<4x27xf32> to vector<4x1xf32>
    %172 = vector.broadcast %171 : vector<4x1xf32> to vector<4x256xf32>
    %173 = vector.broadcast %170 : vector<1x256xf32> to vector<4x256xf32>
    %174 = arith.mulf %172, %173 : vector<4x256xf32>
    %175 = arith.addf %166, %174 : vector<4x256xf32>
    %c16_i32_41 = arith.constant 16 : i32
    %176 = tpu.dynamic_rotate %16 by %c16_i32_41 dim 1 : vector<1x256xf32>, i32 -> vector<1x256xf32>
    %cst_42 = arith.constant 0.000000e+00 : f32
    %177 = vector.broadcast %cst_42 : f32 to vector<1x256xf32>
    %178 = arith.select %4, %176, %177 : vector<1x256xi1>, vector<1x256xf32>
    %179 = vector.extract_strided_slice %17 {offsets = [0, 19], sizes = [4, 1], strides = [1, 1]} : vector<4x27xf32> to vector<4x1xf32>
    %180 = vector.broadcast %179 : vector<4x1xf32> to vector<4x256xf32>
    %181 = vector.broadcast %178 : vector<1x256xf32> to vector<4x256xf32>
    %182 = arith.mulf %180, %181 : vector<4x256xf32>
    %183 = arith.addf %175, %182 : vector<4x256xf32>
    %c15_i32_43 = arith.constant 15 : i32
    %184 = tpu.dynamic_rotate %16 by %c15_i32_43 dim 1 : vector<1x256xf32>, i32 -> vector<1x256xf32>
    %185 = arith.andi %4, %10 : vector<1x256xi1>
    %cst_44 = arith.constant 0.000000e+00 : f32
    %186 = vector.broadcast %cst_44 : f32 to vector<1x256xf32>
    %187 = arith.select %185, %184, %186 : vector<1x256xi1>, vector<1x256xf32>
    %188 = vector.extract_strided_slice %17 {offsets = [0, 20], sizes = [4, 1], strides = [1, 1]} : vector<4x27xf32> to vector<4x1xf32>
    %189 = vector.broadcast %188 : vector<4x1xf32> to vector<4x256xf32>
    %190 = vector.broadcast %187 : vector<1x256xf32> to vector<4x256xf32>
    %191 = arith.mulf %189, %190 : vector<4x256xf32>
    %192 = arith.addf %183, %191 : vector<4x256xf32>
    %c1_i32_45 = arith.constant 1 : i32
    %193 = tpu.dynamic_rotate %16 by %c1_i32_45 dim 1 : vector<1x256xf32>, i32 -> vector<1x256xf32>
    %cst_46 = arith.constant 0.000000e+00 : f32
    %194 = vector.broadcast %cst_46 : f32 to vector<1x256xf32>
    %195 = arith.select %8, %193, %194 : vector<1x256xi1>, vector<1x256xf32>
    %196 = vector.extract_strided_slice %17 {offsets = [0, 21], sizes = [4, 1], strides = [1, 1]} : vector<4x27xf32> to vector<4x1xf32>
    %197 = vector.broadcast %196 : vector<4x1xf32> to vector<4x256xf32>
    %198 = vector.broadcast %195 : vector<1x256xf32> to vector<4x256xf32>
    %199 = arith.mulf %197, %198 : vector<4x256xf32>
    %200 = arith.addf %192, %199 : vector<4x256xf32>
    %201 = vector.extract_strided_slice %17 {offsets = [0, 22], sizes = [4, 1], strides = [1, 1]} : vector<4x27xf32> to vector<4x1xf32>
    %202 = vector.broadcast %201 : vector<4x1xf32> to vector<4x256xf32>
    %203 = vector.broadcast %16 : vector<1x256xf32> to vector<4x256xf32>
    %204 = arith.mulf %202, %203 : vector<4x256xf32>
    %205 = arith.addf %200, %204 : vector<4x256xf32>
    %c255_i32_47 = arith.constant 255 : i32
    %206 = tpu.dynamic_rotate %16 by %c255_i32_47 dim 1 : vector<1x256xf32>, i32 -> vector<1x256xf32>
    %cst_48 = arith.constant 0.000000e+00 : f32
    %207 = vector.broadcast %cst_48 : f32 to vector<1x256xf32>
    %208 = arith.select %10, %206, %207 : vector<1x256xi1>, vector<1x256xf32>
    %209 = vector.extract_strided_slice %17 {offsets = [0, 23], sizes = [4, 1], strides = [1, 1]} : vector<4x27xf32> to vector<4x1xf32>
    %210 = vector.broadcast %209 : vector<4x1xf32> to vector<4x256xf32>
    %211 = vector.broadcast %208 : vector<1x256xf32> to vector<4x256xf32>
    %212 = arith.mulf %210, %211 : vector<4x256xf32>
    %213 = arith.addf %205, %212 : vector<4x256xf32>
    %c241_i32_49 = arith.constant 241 : i32
    %214 = tpu.dynamic_rotate %16 by %c241_i32_49 dim 1 : vector<1x256xf32>, i32 -> vector<1x256xf32>
    %215 = arith.andi %6, %8 : vector<1x256xi1>
    %cst_50 = arith.constant 0.000000e+00 : f32
    %216 = vector.broadcast %cst_50 : f32 to vector<1x256xf32>
    %217 = arith.select %215, %214, %216 : vector<1x256xi1>, vector<1x256xf32>
    %218 = vector.extract_strided_slice %17 {offsets = [0, 24], sizes = [4, 1], strides = [1, 1]} : vector<4x27xf32> to vector<4x1xf32>
    %219 = vector.broadcast %218 : vector<4x1xf32> to vector<4x256xf32>
    %220 = vector.broadcast %217 : vector<1x256xf32> to vector<4x256xf32>
    %221 = arith.mulf %219, %220 : vector<4x256xf32>
    %222 = arith.addf %213, %221 : vector<4x256xf32>
    %c240_i32_51 = arith.constant 240 : i32
    %223 = tpu.dynamic_rotate %16 by %c240_i32_51 dim 1 : vector<1x256xf32>, i32 -> vector<1x256xf32>
    %cst_52 = arith.constant 0.000000e+00 : f32
    %224 = vector.broadcast %cst_52 : f32 to vector<1x256xf32>
    %225 = arith.select %6, %223, %224 : vector<1x256xi1>, vector<1x256xf32>
    %226 = vector.extract_strided_slice %17 {offsets = [0, 25], sizes = [4, 1], strides = [1, 1]} : vector<4x27xf32> to vector<4x1xf32>
    %227 = vector.broadcast %226 : vector<4x1xf32> to vector<4x256xf32>
    %228 = vector.broadcast %225 : vector<1x256xf32> to vector<4x256xf32>
    %229 = arith.mulf %227, %228 : vector<4x256xf32>
    %230 = arith.addf %222, %229 : vector<4x256xf32>
    %c239_i32_53 = arith.constant 239 : i32
    %231 = tpu.dynamic_rotate %16 by %c239_i32_53 dim 1 : vector<1x256xf32>, i32 -> vector<1x256xf32>
    %232 = arith.andi %6, %10 : vector<1x256xi1>
    %cst_54 = arith.constant 0.000000e+00 : f32
    %233 = vector.broadcast %cst_54 : f32 to vector<1x256xf32>
    %234 = arith.select %232, %231, %233 : vector<1x256xi1>, vector<1x256xf32>
    %235 = vector.extract_strided_slice %17 {offsets = [0, 26], sizes = [4, 1], strides = [1, 1]} : vector<4x27xf32> to vector<4x1xf32>
    %236 = vector.broadcast %235 : vector<4x1xf32> to vector<4x256xf32>
    %237 = vector.broadcast %234 : vector<1x256xf32> to vector<4x256xf32>
    %238 = arith.mulf %236, %237 : vector<4x256xf32>
    %239 = arith.addf %230, %238 : vector<4x256xf32>
    %c0_55 = arith.constant 0 : index
    %c0_56 = arith.constant 0 : index
    %c0_57 = arith.constant 0 : index
    %240 = vector.load %arg3[%c0_55, %c0_56, %c0_57] : memref<1x4x256xf32, #tpu.memory_space<vmem>>, vector<1x4x256xf32>
    %241 = vector.shape_cast %240 : vector<1x4x256xf32> to vector<4x256xf32>
    %c0_58 = arith.constant 0 : index
    %c0_59 = arith.constant 0 : index
    %c0_60 = arith.constant 0 : index
    %242 = vector.load %arg7[%c0_58, %c0_59, %c0_60] : memref<1x8x256xf32, #tpu.memory_space<vmem>>, vector<1x4x256xf32>
    %243 = vector.shape_cast %242 : vector<1x4x256xf32> to vector<4x256xf32>
    %244 = vector.shape_cast %241 : vector<4x256xf32> to vector<1x4x256xf32>
    tpu.vector_store %arg7[%c0_58, %c0_59, %c0_60], %244 {strides = array<i32>} : memref<1x8x256xf32, #tpu.memory_space<vmem>>, vector<1x4x256xf32>,
    %c0_61 = arith.constant 0 : index
    %c4 = arith.constant 4 : index
    %c0_62 = arith.constant 0 : index
    %245 = vector.load %arg7[%c0_61, %c4, %c0_62] : memref<1x8x256xf32, #tpu.memory_space<vmem>>, vector<1x4x256xf32>
    %246 = vector.shape_cast %245 : vector<1x4x256xf32> to vector<4x256xf32>
    %247 = vector.shape_cast %239 : vector<4x256xf32> to vector<1x4x256xf32>
    tpu.vector_store %arg7[%c0_61, %c4, %c0_62], %247 {strides = array<i32>} : memref<1x8x256xf32, #tpu.memory_space<vmem>>, vector<1x4x256xf32>,
    return
  }
  func.func @transform_0(%arg0: i32) -> (i32, i32) {
    %c0_i32 = arith.constant 0 : i32
    %c0_i32_0 = arith.constant 0 : i32
    %c0_i32_1 = arith.constant 0 : i32
    return %c0_i32, %c0_i32_0 : i32, i32
  }
  func.func @transform_1(%arg0: i32) -> (i32, i32) {
    %c0_i32 = arith.constant 0 : i32
    %c0_i32_0 = arith.constant 0 : i32
    %c0_i32_1 = arith.constant 0 : i32
    return %c0_i32, %c0_i32_0 : i32, i32
  }
  func.func @transform_2(%arg0: i32) -> (i32, i32, i32) {
    %c0_i32 = arith.constant 0 : i32
    %c0_i32_0 = arith.constant 0 : i32
    %c0_i32_1 = arith.constant 0 : i32
    return %arg0, %c0_i32, %c0_i32_0 : i32, i32, i32
  }
  func.func @transform_3(%arg0: i32) -> (i32, i32, i32) {
    %c0_i32 = arith.constant 0 : i32
    %c0_i32_0 = arith.constant 0 : i32
    %c0_i32_1 = arith.constant 0 : i32
    return %arg0, %c0_i32, %c0_i32_0 : i32, i32, i32
  }
  func.func @transform_4(%arg0: i32) -> (i32, i32, i32) {
    %c0_i32 = arith.constant 0 : i32
    %c0_i32_0 = arith.constant 0 : i32
    %c0_i32_1 = arith.constant 0 : i32
    return %arg0, %c0_i32, %c0_i32_0 : i32, i32, i32
  }
  func.func @transform_5(%arg0: i32) -> (i32, i32, i32) {
    %c0_i32 = arith.constant 0 : i32
    %c0_i32_0 = arith.constant 0 : i32
    %c0_i32_1 = arith.constant 0 : i32
    return %arg0, %c0_i32, %c0_i32_0 : i32, i32, i32
  }
  func.func @transform_6(%arg0: i32) -> (i32, i32, i32) {
    %c0_i32 = arith.constant 0 : i32
    %c0_i32_0 = arith.constant 0 : i32
    %c0_i32_1 = arith.constant 0 : i32
    return %arg0, %c0_i32, %c0_i32_0 : i32, i32, i32
  }
}

</mosaic_0001>

<llo_original>
// kernel: grad_block_forward.1
$region0: #{grad_block_forward.1}
  #allocation0 [shape = 'u32[]', space=smem, size = 0x4, offset = 0x4, fixed_abs, tag = 'smem constant byte address 0x4 - core index']
  #allocation1 [shape = 'u32[144,128]{1,0:T(1,128)}', space=vmem, size = 0x12000, scoped, tag = 'internal scratch']
  %s0 = inlined_call_operand.vmem [shape: f32[4,27], index: 0, kind: input, shape index: {}]
  %s1 = inlined_call_operand.vmem [shape: f32[4,1], index: 1, kind: input, shape index: {}]
  %s2 = inlined_call_operand.vmem [shape: f32[2,4,256], index: 2, kind: input, shape index: {}]
  %s3 = inlined_call_operand.vmem [shape: f32[2,1,256], index: 3, kind: input, shape index: {}]
  %s4 = inlined_call_operand.vmem [shape: f32[2,1,256], index: 4, kind: input, shape index: {}]
  %s5 = inlined_call_operand.vmem [shape: f32[2,1,256], index: 5, kind: input, shape index: {}]
  %s6 = inlined_call_operand.vmem [shape: f32[2,8,256], index: 6, kind: output, shape index: {}]
  %s7 = sld [smem:[#allocation0]]
  $region57: #{grad_block_forward.1} parent=0
    _
  %s9 = ssub.s32 1, %s7
  %s10 = scalar_select 0, %s9, %s7
  loop: start=0, step=1, limit=4
  $region2: #{grad_block_forward.1} parent=0 // loop_pre_header
    _
  $region3: #{grad_block_forward.1} parent=0 // loop_header
    %s12 = sphi 0, %s16
    %p13 = scmp.ge.s32.totalorder %s12, 4
    %s20 = sphi 0, %s20
    %s22 = sphi 0, %s20
    %s23 = sphi 0, %s22
    %s37 = sphi 0, %s23
    %s41 = sphi 0, %s41
    %s43 = sphi 0, %s41
    %s44 = sphi 0, %s43
    %s58 = sphi 0, %s44
    %s64 = sphi 0, %s66
    %s67 = sphi 0, %s64
    %s68 = sphi 0, %s67
    %s84 = sphi 0, %s68
    %s90 = sphi 0, %s92
    %s93 = sphi 0, %s90
    %s94 = sphi 0, %s93
    %s110 = sphi 0, %s94
    %s116 = sphi 0, %s118
    %s119 = sphi 0, %s116
    %s120 = sphi 0, %s119
    %s136 = sphi 0, %s120
    %s142 = sphi 0, %s144
    %s145 = sphi 0, %s142
    %s146 = sphi 0, %s145
    %s162 = sphi 0, %s146
    %s168 = sphi 0, %s170
    %s171 = sphi 0, %s168
    %s172 = sphi 0, %s171
    %s188 = sphi 0, %s172
  $region4: #{grad_block_forward.1} parent=0 // loop_header_branch
    %15 = sbr.rel (%p13) target = $region8
  $region5: #{grad_block_forward.1} parent=0 // loop_body
    %s17 = ssub.s32 %s12, 1
    %s18 = ssub.s32 %s12, 2
    %s19 = sadd.s32 %s12, 1
    %s21 = sadd.s32 %s20, 1
    %p24 = scmp.eq.s32.totalorder %s12, 1
    %p25 = scmp.ne.s32.totalorder %s20, %s22
    %p26 = scmp.eq.s32.totalorder %s12, 0
    %p27 = por %p25, %p26
    %p28 = scmp.ne.s32.totalorder %s20, %s22
    %p29 = scmp.eq.s32.totalorder %s17, 1
    %p30 = por %p28, %p29
    %p31 = scmp.ne.s32.totalorder %s22, %s23
    %p32 = scmp.eq.s32.totalorder %s17, 0
    %p33 = por %p31, %p32
    %p34 = scmp.ne.s32.totalorder %s22, %s23
    %p35 = scmp.eq.s32.totalorder %s18, 1
    %p36 = por %p34, %p35
    %p38 = scmp.ne.s32.totalorder %s23, %s37
    %p39 = scmp.eq.s32.totalorder %s18, 0
    %p40 = por %p38, %p39
    %s42 = sadd.s32 %s41, 1
    %p45 = scmp.eq.s32.totalorder %s12, 1
    %p46 = scmp.ne.s32.totalorder %s41, %s43
    %p47 = scmp.eq.s32.totalorder %s12, 0
    %p48 = por %p46, %p47
    %p49 = scmp.ne.s32.totalorder %s41, %s43
    %p50 = scmp.eq.s32.totalorder %s17, 1
    %p51 = por %p49, %p50
    %p52 = scmp.ne.s32.totalorder %s43, %s44
    %p53 = scmp.eq.s32.totalorder %s17, 0
    %p54 = por %p52, %p53
    %p55 = scmp.ne.s32.totalorder %s43, %s44
    %p56 = scmp.eq.s32.totalorder %s18, 1
    %p57 = por %p55, %p56
    %p59 = scmp.ne.s32.totalorder %s44, %s58
    %p60 = scmp.eq.s32.totalorder %s18, 0
    %p61 = por %p59, %p60
    %s62 = ssub.s32 %s12, %s19
    %p63 = scmp.eq.s32.totalorder %s62, 0
    %s65 = sadd.s32 %s64, 1
    %s66 = scalar_select %p63, %s64, %s65
    %p69 = pneg %p63
    %p70 = scmp.eq.s32.totalorder %s12, 1
    %p71 = por %p69, %p70
    %p72 = scmp.ne.s32.totalorder %s64, %s67
    %p73 = scmp.eq.s32.totalorder %s12, 0
    %p74 = por %p72, %p73
    %p75 = scmp.ne.s32.totalorder %s64, %s67
    %p76 = scmp.eq.s32.totalorder %s17, 1
    %p77 = por %p75, %p76
    %p78 = scmp.ne.s32.totalorder %s67, %s68
    %p79 = scmp.eq.s32.totalorder %s17, 0
    %p80 = por %p78, %p79
    %p81 = scmp.ne.s32.totalorder %s67, %s68
    %p82 = scmp.eq.s32.totalorder %s18, 1
    %p83 = por %p81, %p82
    %p85 = scmp.ne.s32.totalorder %s68, %s84
    %p86 = scmp.eq.s32.totalorder %s18, 0
    %p87 = por %p85, %p86
    %s88 = ssub.s32 %s12, %s19
    %p89 = scmp.eq.s32.totalorder %s88, 0
    %s91 = sadd.s32 %s90, 1
    %s92 = scalar_select %p89, %s90, %s91
    %p95 = pneg %p89
    %p96 = scmp.eq.s32.totalorder %s12, 1
    %p97 = por %p95, %p96
    %p98 = scmp.ne.s32.totalorder %s90, %s93
    %p99 = scmp.eq.s32.totalorder %s12, 0
    %p100 = por %p98, %p99
    %p101 = scmp.ne.s32.totalorder %s90, %s93
    %p102 = scmp.eq.s32.totalorder %s17, 1
    %p103 = por %p101, %p102
    %p104 = scmp.ne.s32.totalorder %s93, %s94
    %p105 = scmp.eq.s32.totalorder %s17, 0
    %p106 = por %p104, %p105
    %p107 = scmp.ne.s32.totalorder %s93, %s94
    %p108 = scmp.eq.s32.totalorder %s18, 1
    %p109 = por %p107, %p108
    %p111 = scmp.ne.s32.totalorder %s94, %s110
    %p112 = scmp.eq.s32.totalorder %s18, 0
    %p113 = por %p111, %p112
    %s114 = ssub.s32 %s12, %s19
    %p115 = scmp.eq.s32.totalorder %s114, 0
    %s117 = sadd.s32 %s116, 1
    %s118 = scalar_select %p115, %s116, %s117
    %p121 = pneg %p115
    %p122 = scmp.eq.s32.totalorder %s12, 1
    %p123 = por %p121, %p122
    %p124 = scmp.ne.s32.totalorder %s116, %s119
    %p125 = scmp.eq.s32.totalorder %s12, 0
    %p126 = por %p124, %p125
    %p127 = scmp.ne.s32.totalorder %s116, %s119
    %p128 = scmp.eq.s32.totalorder %s17, 1
    %p129 = por %p127, %p128
    %p130 = scmp.ne.s32.totalorder %s119, %s120
    %p131 = scmp.eq.s32.totalorder %s17, 0
    %p132 = por %p130, %p131
    %p133 = scmp.ne.s32.totalorder %s119, %s120
    %p134 = scmp.eq.s32.totalorder %s18, 1
    %p135 = por %p133, %p134
    %p137 = scmp.ne.s32.totalorder %s120, %s136
    %p138 = scmp.eq.s32.totalorder %s18, 0
    %p139 = por %p137, %p138
    %s140 = ssub.s32 %s12, %s19
    %p141 = scmp.eq.s32.totalorder %s140, 0
    %s143 = sadd.s32 %s142, 1
    %s144 = scalar_select %p141, %s142, %s143
    %p147 = pneg %p141
    %p148 = scmp.eq.s32.totalorder %s12, 1
    %p149 = por %p147, %p148
    %p150 = scmp.ne.s32.totalorder %s142, %s145
    %p151 = scmp.eq.s32.totalorder %s12, 0
    %p152 = por %p150, %p151
    %p153 = scmp.ne.s32.totalorder %s142, %s145
    %p154 = scmp.eq.s32.totalorder %s17, 1
    %p155 = por %p153, %p154
    %p156 = scmp.ne.s32.totalorder %s145, %s146
    %p157 = scmp.eq.s32.totalorder %s17, 0
    %p158 = por %p156, %p157
    %p159 = scmp.ne.s32.totalorder %s145, %s146
    %p160 = scmp.eq.s32.totalorder %s18, 1
    %p161 = por %p159, %p160
    %p163 = scmp.ne.s32.totalorder %s146, %s162
    %p164 = scmp.eq.s32.totalorder %s18, 0
    %p165 = por %p163, %p164
    %s166 = ssub.s32 %s12, %s19
    %p167 = scmp.eq.s32.totalorder %s166, 0
    %s169 = sadd.s32 %s168, 1
    %s170 = scalar_select %p167, %s168, %s169
    %p173 = pneg %p167
    %p174 = scmp.eq.s32.totalorder %s12, 1
    %p175 = por %p173, %p174
    %p176 = scmp.ne.s32.totalorder %s168, %s171
    %p177 = scmp.eq.s32.totalorder %s12, 0
    %p178 = por %p176, %p177
    %p179 = scmp.ne.s32.totalorder %s168, %s171
    %p180 = scmp.eq.s32.totalorder %s17, 1
    %p181 = por %p179, %p180
    %p182 = scmp.ne.s32.totalorder %s171, %s172
    %p183 = scmp.eq.s32.totalorder %s17, 0
    %p184 = por %p182, %p183
    %p185 = scmp.ne.s32.totalorder %s171, %s172
    %p186 = scmp.eq.s32.totalorder %s18, 1
    %p187 = por %p185, %p186
    %p189 = scmp.ne.s32.totalorder %s172, %s188
    %p190 = scmp.eq.s32.totalorder %s18, 0
    %p191 = por %p189, %p190
    %p192 = scmp.le.s32.totalorder 1, %s12
    %p193 = scmp.lt.s32.totalorder %s12, 3
    %p194 = pnand %p192, %p193
    %p195 = pneg %p194
    // Predicated region
    $region9: #{grad_block_forward.1} parent=5 // pred_check
      _
    $region10: #{grad_block_forward.1} parent=5 // pred_check_branch
      %197 = sbr.rel (%p194) target = $region12
    $region11: #{grad_block_forward.1} parent=5 // pred_region
      %s198 = ssub.s32 %s12, 1
      // Predicated region
      $region13: #{grad_block_forward.1} parent=11 // pred_check
        %p199 = pneg %p33
      $region14: #{grad_block_forward.1} parent=11 // pred_check_branch
        %201 = sbr.rel (%p199) target = $region16
      $region15: #{grad_block_forward.1} parent=11 // pred_region
        _
      $region16: #{grad_block_forward.1} parent=11 // pred_fallthru
        _
      // Predicated region
      $region17: #{grad_block_forward.1} parent=11 // pred_check
        %p202 = pneg %p54
      $region18: #{grad_block_forward.1} parent=11 // pred_check_branch
        %204 = sbr.rel (%p202) target = $region20
      $region19: #{grad_block_forward.1} parent=11 // pred_region
        _
      $region20: #{grad_block_forward.1} parent=11 // pred_fallthru
        _
    $region12: #{grad_block_forward.1} parent=5 // pred_fallthru
      _
    %p205 = scmp.lt.s32.totalorder %s12, 2
    // Predicated region
    $region21: #{grad_block_forward.1} parent=5 // pred_check
      %p206 = pneg %p205
    $region22: #{grad_block_forward.1} parent=5 // pred_check_branch
      %208 = sbr.rel (%p206) target = $region24
    $region23: #{grad_block_forward.1} parent=5 // pred_region
      // Predicated region
      $region25: #{grad_block_forward.1} parent=23 // pred_check
        %p209 = pneg %p74
      $region26: #{grad_block_forward.1} parent=23 // pred_check_branch
        %211 = sbr.rel (%p209) target = $region28
      $region27: #{grad_block_forward.1} parent=23 // pred_region
        %p212 = scmp.lt.s32.totalorder %s12, 1
        %s213 = scalar_select %p212, %s12, 1
        %s214 = smul.addr %s213, 2
        %s215 = smul.addr %s214, 4
        %s216 = scalar_lea.vmem %s2, %s215
      $region28: #{grad_block_forward.1} parent=23 // pred_fallthru
        _
      // Predicated region
      $region29: #{grad_block_forward.1} parent=23 // pred_check
        %p217 = pneg %p100
      $region30: #{grad_block_forward.1} parent=23 // pred_check_branch
        %219 = sbr.rel (%p217) target = $region32
      $region31: #{grad_block_forward.1} parent=23 // pred_region
        %p220 = scmp.lt.s32.totalorder %s12, 1
        %s221 = scalar_select %p220, %s12, 1
        %s222 = smul.addr %s221, 2
        %s223 = scalar_lea.vmem %s3, %s222
      $region32: #{grad_block_forward.1} parent=23 // pred_fallthru
        _
      // Predicated region
      $region33: #{grad_block_forward.1} parent=23 // pred_check
        %p224 = pneg %p126
      $region34: #{grad_block_forward.1} parent=23 // pred_check_branch
        %226 = sbr.rel (%p224) target = $region36
      $region35: #{grad_block_forward.1} parent=23 // pred_region
        %p227 = scmp.lt.s32.totalorder %s12, 1
        %s228 = scalar_select %p227, %s12, 1
        %s229 = smul.addr %s228, 2
        %s230 = scalar_lea.vmem %s4, %s229
      $region36: #{grad_block_forward.1} parent=23 // pred_fallthru
        _
      // Predicated region
      $region37: #{grad_block_forward.1} parent=23 // pred_check
        %p231 = pneg %p152
      $region38: #{grad_block_forward.1} parent=23 // pred_check_branch
        %233 = sbr.rel (%p231) target = $region40
      $region39: #{grad_block_forward.1} parent=23 // pred_region
        %p234 = scmp.lt.s32.totalorder %s12, 1
        %s235 = scalar_select %p234, %s12, 1
        %s236 = smul.addr %s235, 2
        %s237 = scalar_lea.vmem %s5, %s236
      $region40: #{grad_block_forward.1} parent=23 // pred_fallthru
        _
    $region24: #{grad_block_forward.1} parent=5 // pred_fallthru
      _
    %p238 = scmp.le.s32.totalorder 1, %s12
    %p239 = scmp.lt.s32.totalorder %s12, 3
    %p240 = pnand %p238, %p239
    %p241 = pneg %p240
    // Predicated region
    $region41: #{grad_block_forward.1} parent=5 // pred_check
      _
    $region42: #{grad_block_forward.1} parent=5 // pred_check_branch
      %243 = sbr.rel (%p240) target = $region44
    $region43: #{grad_block_forward.1} parent=5 // pred_region
      %s244 = ssub.s32 %s12, 1
      %p245 = pneg %p33
      %p246 = pneg %p30
      %p247 = pneg %p54
      %p248 = pneg %p51
      %p249 = scmp.lt.s32.totalorder %s17, 1
      %s250 = scalar_select %p249, %s17, 1
      %s251 = smul.addr %s250, 2
      %s252 = smul.addr %s251, 4
      %s253 = scalar_lea.vmem %s2, %s252
      %p254 = pneg %p80
      %p255 = pneg %p77
      %p256 = scmp.lt.s32.totalorder %s17, 1
      %s257 = scalar_select %p256, %s17, 1
      %s258 = smul.addr %s257, 2
      %s259 = scalar_lea.vmem %s3, %s258
      %p260 = pneg %p106
      %p261 = pneg %p103
      %p262 = scmp.lt.s32.totalorder %s17, 1
      %s263 = scalar_select %p262, %s17, 1
      %s264 = smul.addr %s263, 2
      %s265 = scalar_lea.vmem %s4, %s264
      %p266 = pneg %p132
      %p267 = pneg %p129
      %p268 = scmp.lt.s32.totalorder %s17, 1
      %s269 = scalar_select %p268, %s17, 1
      %s270 = smul.addr %s269, 2
      %s271 = scalar_lea.vmem %s5, %s270
      %p272 = pneg %p158
      %p273 = pneg %p155
      %p274 = pneg %p184
      %p275 = pneg %p181
      %p276 = scmp.lt.s32.totalorder %s17, 1
      %s277 = scalar_select %p276, %s17, 1
      %s278 = smul.addr %s277, 2
      %s279 = smul.addr %s278, 8
      %s280 = scalar_lea.vmem %s6, %s279
      %p281 = scmp.lt.s32.totalorder %s17, 1
      %s282 = scalar_select %p281, %s17, 1
      %s283 = smul.addr %s282, 2
      %s284 = smul.addr %s283, 4
      %s285 = scalar_lea.vmem %s2, %s284
      %p286 = scmp.lt.s32.totalorder %s17, 1
      %s287 = scalar_select %p286, %s17, 1
      %s288 = smul.addr %s287, 2
      %s289 = scalar_lea.vmem %s3, %s288
      %p290 = scmp.lt.s32.totalorder %s17, 1
      %s291 = scalar_select %p290, %s17, 1
      %s292 = smul.addr %s291, 2
      %s293 = scalar_lea.vmem %s4, %s292
      %p294 = scmp.lt.s32.totalorder %s17, 1
      %s295 = scalar_select %p294, %s17, 1
      %s296 = smul.addr %s295, 2
      %s297 = scalar_lea.vmem %s5, %s296
      %p298 = scmp.lt.s32.totalorder %s17, 1
      %s299 = scalar_select %p298, %s17, 1
      %s300 = smul.addr %s299, 2
      %s301 = smul.addr %s300, 8
      %s302 = scalar_lea.vmem %s6, %s301
      %v303 = vlaneseq
      %v304 = vand.u32 %v303, 127
      %v305 = vadd.s32 %v304, 128
      %v306 = vand.u32 %v304, 15
      %v307 = vand.u32 %v305, 15
      %vm308 = vcmp.ge.s32.totalorder %v304, 16
      %vm309 = vcmp.ge.s32.totalorder %v305, 16
      %vm310 = vcmp.lt.s32.totalorder %v304, 240
      %vm311 = vcmp.lt.s32.totalorder %v305, 240
      %vm312 = vcmp.ge.s32.totalorder %v306, 1
      %vm313 = vcmp.ge.s32.totalorder %v307, 1
      %vm314 = vcmp.le.s32.totalorder %v306, 14
      %vm315 = vcmp.le.s32.totalorder %v307, 14
      %v316 = vld [vmem:[%s289] sm:$0x3]
      %v317 = vld [vmem:[%s293] sm:$0x3]
      %v318 = vld [vmem:[%s297] sm:$0x3]
      %v319 = vld [vmem:[%s0] sm:$0xf]
      %v320 = vld [vmem:[%s1] sm:$0xf]
      %322 = vset.pattern.permute.xlu0 0
      %323 = vperm.xlu0 %322, %v320
      %v324 = vpop.permute.xlu0 %323
      %v327 = vlaneseq
      %v328 = vshrl.u32 %v327, 7
      %v329 = vsub.s32 0, %v328
      %v330 = vrot.slane %v316, %v329
      %v331 = vlaneseq
      %v332 = vshrl.u32 %v331, 7
      %v333 = vsub.s32 1, %v332
      %v334 = vrot.slane %v316, %v333
      %337 = vrot.lane.b32.xlu0 %v330, 17
      %v338 = vpop.permute.xlu0 %337
      %339 = vrot.lane.b32.xlu0 %v334, 17
      %v340 = vpop.permute.xlu0 %339
      %vm341 = vcmp.lt.s32.totalorder %v304, 17
      %v342 = vsel %vm341, %v338, %v340
      %v343 = vsel %vm341, %v340, %v338
      %vm344 = vmand %vm308, %vm312
      %vm345 = vmand %vm309, %vm313
      %v346 = vsel %vm344, %v343, 0.0
      %v347 = vsel %vm345, %v342, 0.0
      %349 = vset.pattern.permute.xlu0 0
      %350 = vperm.xlu0 %349, %v319
      %v351 = vpop.permute.xlu0 %350
      %v353 = vlaneseq
      %v354 = vshrl.u32 %v353, 7
      %v355 = vsub.s32 0, %v354
      %v356 = vrot.slane %v346, %v355
      %v357 = vlaneseq
      %v358 = vshrl.u32 %v357, 7
      %v359 = vsub.s32 0, %v358
      %v360 = vrot.slane %v347, %v359
      %v361 = vmul.f32 %v351, %v356
      %v362 = vmul.f32 %v351, %v360
      %v363 = vadd.f32 %v324, %v361
      %v364 = vadd.f32 %v324, %v362
      %365 = vrot.lane.b32.xlu0 %v330, 16
      %v366 = vpop.permute.xlu0 %365
      %367 = vrot.lane.b32.xlu0 %v334, 16
      %v368 = vpop.permute.xlu0 %367
      %vm369 = vcmp.lt.s32.totalorder %v304, 16
      %v370 = vsel %vm369, %v366, %v368
      %v371 = vsel %vm369, %v368, %v366
      %v372 = vsel %vm308, %v371, 0.0
      %v373 = vsel %vm309, %v370, 0.0
      %374 = vset.pattern.permute.xlu0 1
      %375 = vperm.xlu0 %374, %v319
      %v376 = vpop.permute.xlu0 %375
      %v378 = vlaneseq
      %v379 = vshrl.u32 %v378, 7
      %v380 = vsub.s32 0, %v379
      %v381 = vrot.slane %v372, %v380
      %v382 = vlaneseq
      %v383 = vshrl.u32 %v382, 7
      %v384 = vsub.s32 0, %v383
      %v385 = vrot.slane %v373, %v384
      %v386 = vmul.f32 %v376, %v381
      %v387 = vmul.f32 %v376, %v385
      %v388 = vadd.f32 %v363, %v386
      %v389 = vadd.f32 %v364, %v387
      %390 = vrot.lane.b32.xlu0 %v330, 15
      %v391 = vpop.permute.xlu0 %390
      %392 = vrot.lane.b32.xlu0 %v334, 15
      %v393 = vpop.permute.xlu0 %392
      %vm394 = vcmp.lt.s32.totalorder %v304, 15
      %v395 = vsel %vm394, %v391, %v393
      %v396 = vsel %vm394, %v393, %v391
      %vm397 = vmand %vm308, %vm314
      %vm398 = vmand %vm309, %vm315
      %v399 = vsel %vm397, %v396, 0.0
      %v400 = vsel %vm398, %v395, 0.0
      %401 = vset.pattern.permute.xlu0 2
      %402 = vperm.xlu0 %401, %v319
      %v403 = vpop.permute.xlu0 %402
      %v405 = vlaneseq
      %v406 = vshrl.u32 %v405, 7
      %v407 = vsub.s32 0, %v406
      %v408 = vrot.slane %v399, %v407
      %v409 = vlaneseq
      %v410 = vshrl.u32 %v409, 7
      %v411 = vsub.s32 0, %v410
      %v412 = vrot.slane %v400, %v411
      %v413 = vmul.f32 %v403, %v408
      %v414 = vmul.f32 %v403, %v412
      %v415 = vadd.f32 %v388, %v413
      %v416 = vadd.f32 %v389, %v414
      %417 = vrot.lane.b32.xlu0 %v330, 1
      %v418 = vpop.permute.xlu0 %417
      %419 = vrot.lane.b32.xlu0 %v334, 1
      %v420 = vpop.permute.xlu0 %419
      %vm421 = vcmp.lt.s32.totalorder %v304, 1
      %v422 = vsel %vm421, %v418, %v420
      %v423 = vsel %vm421, %v420, %v418
      %v424 = vsel %vm312, %v423, 0.0
      %v425 = vsel %vm313, %v422, 0.0
      %426 = vset.pattern.permute.xlu0 3
      %427 = vperm.xlu0 %426, %v319
      %v428 = vpop.permute.xlu0 %427
      %v430 = vlaneseq
      %v431 = vshrl.u32 %v430, 7
      %v432 = vsub.s32 0, %v431
      %v433 = vrot.slane %v424, %v432
      %v434 = vlaneseq
      %v435 = vshrl.u32 %v434, 7
      %v436 = vsub.s32 0, %v435
      %v437 = vrot.slane %v425, %v436
      %v438 = vmul.f32 %v428, %v433
      %v439 = vmul.f32 %v428, %v437
      %v440 = vadd.f32 %v415, %v438
      %v441 = vadd.f32 %v416, %v439
      %442 = vset.pattern.permute.xlu0 4
      %443 = vperm.xlu0 %442, %v319
      %v444 = vpop.permute.xlu0 %443
      %v446 = vmul.f32 %v444, %v330
      %v447 = vmul.f32 %v444, %v334
      %v448 = vadd.f32 %v440, %v446
      %v449 = vadd.f32 %v441, %v447
      %450 = vrot.lane.b32.xlu0 %v330, 127
      %v451 = vpop.permute.xlu0 %450
      %452 = vrot.lane.b32.xlu0 %v334, 127
      %v453 = vpop.permute.xlu0 %452
      %vm454 = vcmp.lt.s32.totalorder %v304, 127
      %v455 = vsel %vm454, %v451, %v453
      %v456 = vsel %vm454, %v453, %v451
      %v457 = vsel %vm314, %v455, 0.0
      %v458 = vsel %vm315, %v456, 0.0
      %459 = vset.pattern.permute.xlu0 5
      %460 = vperm.xlu0 %459, %v319
      %v461 = vpop.permute.xlu0 %460
      %v463 = vlaneseq
      %v464 = vshrl.u32 %v463, 7
      %v465 = vsub.s32 0, %v464
      %v466 = vrot.slane %v457, %v465
      %v467 = vlaneseq
      %v468 = vshrl.u32 %v467, 7
      %v469 = vsub.s32 0, %v468
      %v470 = vrot.slane %v458, %v469
      %v471 = vmul.f32 %v461, %v466
      %v472 = vmul.f32 %v461, %v470
      %v473 = vadd.f32 %v448, %v471
      %v474 = vadd.f32 %v449, %v472
      %475 = vrot.lane.b32.xlu0 %v330, 113
      %v476 = vpop.permute.xlu0 %475
      %477 = vrot.lane.b32.xlu0 %v334, 113
      %v478 = vpop.permute.xlu0 %477
      %vm479 = vcmp.lt.s32.totalorder %v304, 113
      %v480 = vsel %vm479, %v476, %v478
      %v481 = vsel %vm479, %v478, %v476
      %vm482 = vmand %vm310, %vm312
      %vm483 = vmand %vm311, %vm313
      %v484 = vsel %vm482, %v480, 0.0
      %v485 = vsel %vm483, %v481, 0.0
      %486 = vset.pattern.permute.xlu0 6
      %487 = vperm.xlu0 %486, %v319
      %v488 = vpop.permute.xlu0 %487
      %v490 = vlaneseq
      %v491 = vshrl.u32 %v490, 7
      %v492 = vsub.s32 0, %v491
      %v493 = vrot.slane %v484, %v492
      %v494 = vlaneseq
      %v495 = vshrl.u32 %v494, 7
      %v496 = vsub.s32 0, %v495
      %v497 = vrot.slane %v485, %v496
      %v498 = vmul.f32 %v488, %v493
      %v499 = vmul.f32 %v488, %v497
      %v500 = vadd.f32 %v473, %v498
      %v501 = vadd.f32 %v474, %v499
      %502 = vrot.lane.b32.xlu0 %v330, 112
      %v503 = vpop.permute.xlu0 %502
      %504 = vrot.lane.b32.xlu0 %v334, 112
      %v505 = vpop.permute.xlu0 %504
      %vm506 = vcmp.lt.s32.totalorder %v304, 112
      %v507 = vsel %vm506, %v503, %v505
      %v508 = vsel %vm506, %v505, %v503
      %v509 = vsel %vm310, %v507, 0.0
      %v510 = vsel %vm311, %v508, 0.0
      %511 = vset.pattern.permute.xlu0 7
      %512 = vperm.xlu0 %511, %v319
      %v513 = vpop.permute.xlu0 %512
      %v515 = vlaneseq
      %v516 = vshrl.u32 %v515, 7
      %v517 = vsub.s32 0, %v516
      %v518 = vrot.slane %v509, %v517
      %v519 = vlaneseq
      %v520 = vshrl.u32 %v519, 7
      %v521 = vsub.s32 0, %v520
      %v522 = vrot.slane %v510, %v521
      %v523 = vmul.f32 %v513, %v518
      %v524 = vmul.f32 %v513, %v522
      %v525 = vadd.f32 %v500, %v523
      %v526 = vadd.f32 %v501, %v524
      %527 = vrot.lane.b32.xlu0 %v330, 111
      %v528 = vpop.permute.xlu0 %527
      %529 = vrot.lane.b32.xlu0 %v334, 111
      %v530 = vpop.permute.xlu0 %529
      %vm531 = vcmp.lt.s32.totalorder %v304, 111
      %v532 = vsel %vm531, %v528, %v530
      %v533 = vsel %vm531, %v530, %v528
      %vm534 = vmand %vm310, %vm314
      %vm535 = vmand %vm311, %vm315
      %v536 = vsel %vm534, %v532, 0.0
      %v537 = vsel %vm535, %v533, 0.0
      %538 = vset.pattern.permute.xlu0 8
      %539 = vperm.xlu0 %538, %v319
      %v540 = vpop.permute.xlu0 %539
      %v542 = vlaneseq
      %v543 = vshrl.u32 %v542, 7
      %v544 = vsub.s32 0, %v543
      %v545 = vrot.slane %v536, %v544
      %v546 = vlaneseq
      %v547 = vshrl.u32 %v546, 7
      %v548 = vsub.s32 0, %v547
      %v549 = vrot.slane %v537, %v548
      %v550 = vmul.f32 %v540, %v545
      %v551 = vmul.f32 %v540, %v549
      %v552 = vadd.f32 %v525, %v550
      %v553 = vadd.f32 %v526, %v551
      %v555 = vlaneseq
      %v556 = vshrl.u32 %v555, 7
      %v557 = vsub.s32 0, %v556
      %v558 = vrot.slane %v317, %v557
      %v559 = vlaneseq
      %v560 = vshrl.u32 %v559, 7
      %v561 = vsub.s32 1, %v560
      %v562 = vrot.slane %v317, %v561
      %565 = vrot.lane.b32.xlu0 %v558, 17
      %v566 = vpop.permute.xlu0 %565
      %567 = vrot.lane.b32.xlu0 %v562, 17
      %v568 = vpop.permute.xlu0 %567
      %v569 = vsel %vm341, %v566, %v568
      %v570 = vsel %vm341, %v568, %v566
      %v571 = vsel %vm344, %v570, 0.0
      %v572 = vsel %vm345, %v569, 0.0
      %573 = vset.pattern.permute.xlu0 9
      %574 = vperm.xlu0 %573, %v319
      %v575 = vpop.permute.xlu0 %574
      %v577 = vlaneseq
      %v578 = vshrl.u32 %v577, 7
      %v579 = vsub.s32 0, %v578
      %v580 = vrot.slane %v571, %v579
      %v581 = vlaneseq
      %v582 = vshrl.u32 %v581, 7
      %v583 = vsub.s32 0, %v582
      %v584 = vrot.slane %v572, %v583
      %v585 = vmul.f32 %v575, %v580
      %v586 = vmul.f32 %v575, %v584
      %v587 = vadd.f32 %v552, %v585
      %v588 = vadd.f32 %v553, %v586
      %589 = vrot.lane.b32.xlu0 %v558, 16
      %v590 = vpop.permute.xlu0 %589
      %591 = vrot.lane.b32.xlu0 %v562, 16
      %v592 = vpop.permute.xlu0 %591
      %v593 = vsel %vm369, %v590, %v592
      %v594 = vsel %vm369, %v592, %v590
      %v595 = vsel %vm308, %v594, 0.0
      %v596 = vsel %vm309, %v593, 0.0
      %597 = vset.pattern.permute.xlu0 10
      %598 = vperm.xlu0 %597, %v319
      %v599 = vpop.permute.xlu0 %598
      %v601 = vlaneseq
      %v602 = vshrl.u32 %v601, 7
      %v603 = vsub.s32 0, %v602
      %v604 = vrot.slane %v595, %v603
      %v605 = vlaneseq
      %v606 = vshrl.u32 %v605, 7
      %v607 = vsub.s32 0, %v606
      %v608 = vrot.slane %v596, %v607
      %v609 = vmul.f32 %v599, %v604
      %v610 = vmul.f32 %v599, %v608
      %v611 = vadd.f32 %v587, %v609
      %v612 = vadd.f32 %v588, %v610
      %613 = vrot.lane.b32.xlu0 %v558, 15
      %v614 = vpop.permute.xlu0 %613
      %615 = vrot.lane.b32.xlu0 %v562, 15
      %v616 = vpop.permute.xlu0 %615
      %v617 = vsel %vm394, %v614, %v616
      %v618 = vsel %vm394, %v616, %v614
      %v619 = vsel %vm397, %v618, 0.0
      %v620 = vsel %vm398, %v617, 0.0
      %621 = vset.pattern.permute.xlu0 11
      %622 = vperm.xlu0 %621, %v319
      %v623 = vpop.permute.xlu0 %622
      %v625 = vlaneseq
      %v626 = vshrl.u32 %v625, 7
      %v627 = vsub.s32 0, %v626
      %v628 = vrot.slane %v619, %v627
      %v629 = vlaneseq
      %v630 = vshrl.u32 %v629, 7
      %v631 = vsub.s32 0, %v630
      %v632 = vrot.slane %v620, %v631
      %v633 = vmul.f32 %v623, %v628
      %v634 = vmul.f32 %v623, %v632
      %v635 = vadd.f32 %v611, %v633
      %v636 = vadd.f32 %v612, %v634
      %637 = vrot.lane.b32.xlu0 %v558, 1
      %v638 = vpop.permute.xlu0 %637
      %639 = vrot.lane.b32.xlu0 %v562, 1
      %v640 = vpop.permute.xlu0 %639
      %v641 = vsel %vm421, %v638, %v640
      %v642 = vsel %vm421, %v640, %v638
      %v643 = vsel %vm312, %v642, 0.0
      %v644 = vsel %vm313, %v641, 0.0
      %645 = vset.pattern.permute.xlu0 12
      %646 = vperm.xlu0 %645, %v319
      %v647 = vpop.permute.xlu0 %646
      %v649 = vlaneseq
      %v650 = vshrl.u32 %v649, 7
      %v651 = vsub.s32 0, %v650
      %v652 = vrot.slane %v643, %v651
      %v653 = vlaneseq
      %v654 = vshrl.u32 %v653, 7
      %v655 = vsub.s32 0, %v654
      %v656 = vrot.slane %v644, %v655
      %v657 = vmul.f32 %v647, %v652
      %v658 = vmul.f32 %v647, %v656
      %v659 = vadd.f32 %v635, %v657
      %v660 = vadd.f32 %v636, %v658
      %661 = vset.pattern.permute.xlu0 13
      %662 = vperm.xlu0 %661, %v319
      %v663 = vpop.permute.xlu0 %662
      %v665 = vmul.f32 %v663, %v558
      %v666 = vmul.f32 %v663, %v562
      %v667 = vadd.f32 %v659, %v665
      %v668 = vadd.f32 %v660, %v666
      %669 = vrot.lane.b32.xlu0 %v558, 127
      %v670 = vpop.permute.xlu0 %669
      %671 = vrot.lane.b32.xlu0 %v562, 127
      %v672 = vpop.permute.xlu0 %671
      %v673 = vsel %vm454, %v670, %v672
      %v674 = vsel %vm454, %v672, %v670
      %v675 = vsel %vm314, %v673, 0.0
      %v676 = vsel %vm315, %v674, 0.0
      %677 = vset.pattern.permute.xlu0 14
      %678 = vperm.xlu0 %677, %v319
      %v679 = vpop.permute.xlu0 %678
      %v681 = vlaneseq
      %v682 = vshrl.u32 %v681, 7
      %v683 = vsub.s32 0, %v682
      %v684 = vrot.slane %v675, %v683
      %v685 = vlaneseq
      %v686 = vshrl.u32 %v685, 7
      %v687 = vsub.s32 0, %v686
      %v688 = vrot.slane %v676, %v687
      %v689 = vmul.f32 %v679, %v684
      %v690 = vmul.f32 %v679, %v688
      %v691 = vadd.f32 %v667, %v689
      %v692 = vadd.f32 %v668, %v690
      %693 = vrot.lane.b32.xlu0 %v558, 113
      %v694 = vpop.permute.xlu0 %693
      %695 = vrot.lane.b32.xlu0 %v562, 113
      %v696 = vpop.permute.xlu0 %695
      %v697 = vsel %vm479, %v694, %v696
      %v698 = vsel %vm479, %v696, %v694
      %v699 = vsel %vm482, %v697, 0.0
      %v700 = vsel %vm483, %v698, 0.0
      %701 = vset.pattern.permute.xlu0 15
      %702 = vperm.xlu0 %701, %v319
      %v703 = vpop.permute.xlu0 %702
      %v705 = vlaneseq
      %v706 = vshrl.u32 %v705, 7
      %v707 = vsub.s32 0, %v706
      %v708 = vrot.slane %v699, %v707
      %v709 = vlaneseq
      %v710 = vshrl.u32 %v709, 7
      %v711 = vsub.s32 0, %v710
      %v712 = vrot.slane %v700, %v711
      %v713 = vmul.f32 %v703, %v708
      %v714 = vmul.f32 %v703, %v712
      %v715 = vadd.f32 %v691, %v713
      %v716 = vadd.f32 %v692, %v714
      %717 = vrot.lane.b32.xlu0 %v558, 112
      %v718 = vpop.permute.xlu0 %717
      %719 = vrot.lane.b32.xlu0 %v562, 112
      %v720 = vpop.permute.xlu0 %719
      %v721 = vsel %vm506, %v718, %v720
      %v722 = vsel %vm506, %v720, %v718
      %v723 = vsel %vm310, %v721, 0.0
      %v724 = vsel %vm311, %v722, 0.0
      %725 = vset.pattern.permute.xlu0 16
      %726 = vperm.xlu0 %725, %v319
      %v727 = vpop.permute.xlu0 %726
      %v729 = vlaneseq
      %v730 = vshrl.u32 %v729, 7
      %v731 = vsub.s32 0, %v730
      %v732 = vrot.slane %v723, %v731
      %v733 = vlaneseq
      %v734 = vshrl.u32 %v733, 7
      %v735 = vsub.s32 0, %v734
      %v736 = vrot.slane %v724, %v735
      %v737 = vmul.f32 %v727, %v732
      %v738 = vmul.f32 %v727, %v736
      %v739 = vadd.f32 %v715, %v737
      %v740 = vadd.f32 %v716, %v738
      %741 = vrot.lane.b32.xlu0 %v558, 111
      %v742 = vpop.permute.xlu0 %741
      %743 = vrot.lane.b32.xlu0 %v562, 111
      %v744 = vpop.permute.xlu0 %743
      %v745 = vsel %vm531, %v742, %v744
      %v746 = vsel %vm531, %v744, %v742
      %v747 = vsel %vm534, %v745, 0.0
      %v748 = vsel %vm535, %v746, 0.0
      %749 = vset.pattern.permute.xlu0 17
      %750 = vperm.xlu0 %749, %v319
      %v751 = vpop.permute.xlu0 %750
      %v753 = vlaneseq
      %v754 = vshrl.u32 %v753, 7
      %v755 = vsub.s32 0, %v754
      %v756 = vrot.slane %v747, %v755
      %v757 = vlaneseq
      %v758 = vshrl.u32 %v757, 7
      %v759 = vsub.s32 0, %v758
      %v760 = vrot.slane %v748, %v759
      %v761 = vmul.f32 %v751, %v756
      %v762 = vmul.f32 %v751, %v760
      %v763 = vadd.f32 %v739, %v761
      %v764 = vadd.f32 %v740, %v762
      %v766 = vlaneseq
      %v767 = vshrl.u32 %v766, 7
      %v768 = vsub.s32 0, %v767
      %v769 = vrot.slane %v318, %v768
      %v770 = vlaneseq
      %v771 = vshrl.u32 %v770, 7
      %v772 = vsub.s32 1, %v771
      %v773 = vrot.slane %v318, %v772
      %776 = vrot.lane.b32.xlu0 %v769, 17
      %v777 = vpop.permute.xlu0 %776
      %778 = vrot.lane.b32.xlu0 %v773, 17
      %v779 = vpop.permute.xlu0 %778
      %v780 = vsel %vm341, %v777, %v779
      %v781 = vsel %vm341, %v779, %v777
      %v782 = vsel %vm344, %v781, 0.0
      %v783 = vsel %vm345, %v780, 0.0
      %784 = vset.pattern.permute.xlu0 18
      %785 = vperm.xlu0 %784, %v319
      %v786 = vpop.permute.xlu0 %785
      %v788 = vlaneseq
      %v789 = vshrl.u32 %v788, 7
      %v790 = vsub.s32 0, %v789
      %v791 = vrot.slane %v782, %v790
      %v792 = vlaneseq
      %v793 = vshrl.u32 %v792, 7
      %v794 = vsub.s32 0, %v793
      %v795 = vrot.slane %v783, %v794
      %v796 = vmul.f32 %v786, %v791
      %v797 = vmul.f32 %v786, %v795
      %v798 = vadd.f32 %v763, %v796
      %v799 = vadd.f32 %v764, %v797
      %800 = vrot.lane.b32.xlu0 %v769, 16
      %v801 = vpop.permute.xlu0 %800
      %802 = vrot.lane.b32.xlu0 %v773, 16
      %v803 = vpop.permute.xlu0 %802
      %v804 = vsel %vm369, %v801, %v803
      %v805 = vsel %vm369, %v803, %v801
      %v806 = vsel %vm308, %v805, 0.0
      %v807 = vsel %vm309, %v804, 0.0
      %808 = vset.pattern.permute.xlu0 19
      %809 = vperm.xlu0 %808, %v319
      %v810 = vpop.permute.xlu0 %809
      %v812 = vlaneseq
      %v813 = vshrl.u32 %v812, 7
      %v814 = vsub.s32 0, %v813
      %v815 = vrot.slane %v806, %v814
      %v816 = vlaneseq
      %v817 = vshrl.u32 %v816, 7
      %v818 = vsub.s32 0, %v817
      %v819 = vrot.slane %v807, %v818
      %v820 = vmul.f32 %v810, %v815
      %v821 = vmul.f32 %v810, %v819
      %v822 = vadd.f32 %v798, %v820
      %v823 = vadd.f32 %v799, %v821
      %824 = vrot.lane.b32.xlu0 %v769, 15
      %v825 = vpop.permute.xlu0 %824
      %826 = vrot.lane.b32.xlu0 %v773, 15
      %v827 = vpop.permute.xlu0 %826
      %v828 = vsel %vm394, %v825, %v827
      %v829 = vsel %vm394, %v827, %v825
      %v830 = vsel %vm397, %v829, 0.0
      %v831 = vsel %vm398, %v828, 0.0
      %832 = vset.pattern.permute.xlu0 20
      %833 = vperm.xlu0 %832, %v319
      %v834 = vpop.permute.xlu0 %833
      %v836 = vlaneseq
      %v837 = vshrl.u32 %v836, 7
      %v838 = vsub.s32 0, %v837
      %v839 = vrot.slane %v830, %v838
      %v840 = vlaneseq
      %v841 = vshrl.u32 %v840, 7
      %v842 = vsub.s32 0, %v841
      %v843 = vrot.slane %v831, %v842
      %v844 = vmul.f32 %v834, %v839
      %v845 = vmul.f32 %v834, %v843
      %v846 = vadd.f32 %v822, %v844
      %v847 = vadd.f32 %v823, %v845
      %848 = vrot.lane.b32.xlu0 %v769, 1
      %v849 = vpop.permute.xlu0 %848
      %850 = vrot.lane.b32.xlu0 %v773, 1
      %v851 = vpop.permute.xlu0 %850
      %v852 = vsel %vm421, %v849, %v851
      %v853 = vsel %vm421, %v851, %v849
      %v854 = vsel %vm312, %v853, 0.0
      %v855 = vsel %vm313, %v852, 0.0
      %856 = vset.pattern.permute.xlu0 21
      %857 = vperm.xlu0 %856, %v319
      %v858 = vpop.permute.xlu0 %857
      %v860 = vlaneseq
      %v861 = vshrl.u32 %v860, 7
      %v862 = vsub.s32 0, %v861
      %v863 = vrot.slane %v854, %v862
      %v864 = vlaneseq
      %v865 = vshrl.u32 %v864, 7
      %v866 = vsub.s32 0, %v865
      %v867 = vrot.slane %v855, %v866
      %v868 = vmul.f32 %v858, %v863
      %v869 = vmul.f32 %v858, %v867
      %v870 = vadd.f32 %v846, %v868
      %v871 = vadd.f32 %v847, %v869
      %872 = vset.pattern.permute.xlu0 22
      %873 = vperm.xlu0 %872, %v319
      %v874 = vpop.permute.xlu0 %873
      %v876 = vmul.f32 %v874, %v769
      %v877 = vmul.f32 %v874, %v773
      %v878 = vadd.f32 %v870, %v876
      %v879 = vadd.f32 %v871, %v877
      %880 = vrot.lane.b32.xlu0 %v769, 127
      %v881 = vpop.permute.xlu0 %880
      %882 = vrot.lane.b32.xlu0 %v773, 127
      %v883 = vpop.permute.xlu0 %882
      %v884 = vsel %vm454, %v881, %v883
      %v885 = vsel %vm454, %v883, %v881
      %v886 = vsel %vm314, %v884, 0.0
      %v887 = vsel %vm315, %v885, 0.0
      %888 = vset.pattern.permute.xlu0 23
      %889 = vperm.xlu0 %888, %v319
      %v890 = vpop.permute.xlu0 %889
      %v892 = vlaneseq
      %v893 = vshrl.u32 %v892, 7
      %v894 = vsub.s32 0, %v893
      %v895 = vrot.slane %v886, %v894
      %v896 = vlaneseq
      %v897 = vshrl.u32 %v896, 7
      %v898 = vsub.s32 0, %v897
      %v899 = vrot.slane %v887, %v898
      %v900 = vmul.f32 %v890, %v895
      %v901 = vmul.f32 %v890, %v899
      %v902 = vadd.f32 %v878, %v900
      %v903 = vadd.f32 %v879, %v901
      %904 = vrot.lane.b32.xlu0 %v769, 113
      %v905 = vpop.permute.xlu0 %904
      %906 = vrot.lane.b32.xlu0 %v773, 113
      %v907 = vpop.permute.xlu0 %906
      %v908 = vsel %vm479, %v905, %v907
      %v909 = vsel %vm479, %v907, %v905
      %v910 = vsel %vm482, %v908, 0.0
      %v911 = vsel %vm483, %v909, 0.0
      %912 = vset.pattern.permute.xlu0 24
      %913 = vperm.xlu0 %912, %v319
      %v914 = vpop.permute.xlu0 %913
      %v916 = vlaneseq
      %v917 = vshrl.u32 %v916, 7
      %v918 = vsub.s32 0, %v917
      %v919 = vrot.slane %v910, %v918
      %v920 = vlaneseq
      %v921 = vshrl.u32 %v920, 7
      %v922 = vsub.s32 0, %v921
      %v923 = vrot.slane %v911, %v922
      %v924 = vmul.f32 %v914, %v919
      %v925 = vmul.f32 %v914, %v923
      %v926 = vadd.f32 %v902, %v924
      %v927 = vadd.f32 %v903, %v925
      %928 = vrot.lane.b32.xlu0 %v769, 112
      %v929 = vpop.permute.xlu0 %928
      %930 = vrot.lane.b32.xlu0 %v773, 112
      %v931 = vpop.permute.xlu0 %930
      %v932 = vsel %vm506, %v929, %v931
      %v933 = vsel %vm506, %v931, %v929
      %v934 = vsel %vm310, %v932, 0.0
      %v935 = vsel %vm311, %v933, 0.0
      %936 = vset.pattern.permute.xlu0 25
      %937 = vperm.xlu0 %936, %v319
      %v938 = vpop.permute.xlu0 %937
      %v940 = vlaneseq
      %v941 = vshrl.u32 %v940, 7
      %v942 = vsub.s32 0, %v941
      %v943 = vrot.slane %v934, %v942
      %v944 = vlaneseq
      %v945 = vshrl.u32 %v944, 7
      %v946 = vsub.s32 0, %v945
      %v947 = vrot.slane %v935, %v946
      %v948 = vmul.f32 %v938, %v943
      %v949 = vmul.f32 %v938, %v947
      %v950 = vadd.f32 %v926, %v948
      %v951 = vadd.f32 %v927, %v949
      %952 = vrot.lane.b32.xlu0 %v769, 111
      %v953 = vpop.permute.xlu0 %952
      %954 = vrot.lane.b32.xlu0 %v773, 111
      %v955 = vpop.permute.xlu0 %954
      %v956 = vsel %vm531, %v953, %v955
      %v957 = vsel %vm531, %v955, %v953
      %v958 = vsel %vm534, %v956, 0.0
      %v959 = vsel %vm535, %v957, 0.0
      %960 = vset.pattern.permute.xlu0 26
      %961 = vperm.xlu0 %960, %v319
      %v962 = vpop.permute.xlu0 %961
      %v964 = vlaneseq
      %v965 = vshrl.u32 %v964, 7
      %v966 = vsub.s32 0, %v965
      %v967 = vrot.slane %v958, %v966
      %v968 = vlaneseq
      %v969 = vshrl.u32 %v968, 7
      %v970 = vsub.s32 0, %v969
      %v971 = vrot.slane %v959, %v970
      %v972 = vmul.f32 %v962, %v967
      %v973 = vmul.f32 %v962, %v971
      %v974 = vadd.f32 %v950, %v972
      %v975 = vadd.f32 %v951, %v973
      %v976 = vld [vmem:[%s285] sm:$0xff]
      %v978 = vcombine.high %v976, %v976
      %980 = vst [vmem:[%s302] sm:$0xf] %v976
      %981 = vst [vmem:[%s302 + $0x8] sm:$0xf] %v978
      %v984 = vrot.slane %v974, 4
      %v985 = vrot.slane %v975, 4
      %988 = vst [vmem:[%s302] sm:$0xf0] %v984
      %989 = vst [vmem:[%s302 + $0x8] sm:$0xf0] %v985
      %p990 = scmp.lt.s32.totalorder %s17, 1
      %s991 = scalar_select %p990, %s17, 1
      %s992 = smul.addr %s991, 2
      %s993 = smul.addr %s992, 8
      %s994 = scalar_lea.vmem %s6, %s993
      // Predicated region
      $region45: #{grad_block_forward.1} parent=43 // pred_check
        %p995 = pneg %p181
      $region46: #{grad_block_forward.1} parent=43 // pred_check_branch
        %997 = sbr.rel (%p995) target = $region48
      $region47: #{grad_block_forward.1} parent=43 // pred_region
        _
      $region48: #{grad_block_forward.1} parent=43 // pred_fallthru
        _
    $region44: #{grad_block_forward.1} parent=5 // pred_fallthru
      _
    %p998 = scmp.le.s32.totalorder 2, %s12
    // Predicated region
    $region49: #{grad_block_forward.1} parent=5 // pred_check
      %p999 = pneg %p998
    $region50: #{grad_block_forward.1} parent=5 // pred_check_branch
      %1001 = sbr.rel (%p999) target = $region52
    $region51: #{grad_block_forward.1} parent=5 // pred_region
      %s1002 = ssub.s32 %s12, 2
      // Predicated region
      $region53: #{grad_block_forward.1} parent=51 // pred_check
        %p1003 = pneg %p187
      $region54: #{grad_block_forward.1} parent=51 // pred_check_branch
        %1005 = sbr.rel (%p1003) target = $region56
      $region55: #{grad_block_forward.1} parent=51 // pred_region
        %p1006 = scmp.lt.s32.totalorder %s18, 1
        %s1007 = scalar_select %p1006, %s18, 1
        %s1008 = smul.addr %s1007, 2
        %s1009 = smul.addr %s1008, 8
        %s1010 = scalar_lea.vmem %s6, %s1009
      $region56: #{grad_block_forward.1} parent=51 // pred_fallthru
        _
    $region52: #{grad_block_forward.1} parent=5 // pred_fallthru
      _
  $region6: #{grad_block_forward.1} parent=0 // loop_footer
    %s16 = sadd.s32 1, %s12
  $region7: #{grad_block_forward.1} parent=0 // loop_footer_branch
    %11 = sbr.rel target = $region3
  $region8: #{grad_block_forward.1} parent=0 // loop_exit
    _

</llo_original>
